<compile_context>
chip_gen: v7x
topology: tpu7x:2x2x1
jax: 0.10.0
libtpu: 0.0.40
codegen_flags: <defaults>
</compile_context>

<pallas_src>
import math
import numpy as np
import jax
import jax.numpy as jnp
from jax.experimental import pallas as pl
from jax.experimental.pallas import tpu as pltpu


# ----------------------------- schedule setup (host, float64) -----------------------------

def cosine_beta_schedule(timesteps, s=0.008):
    steps = timesteps + 1
    x = np.linspace(0, timesteps, steps, dtype=np.float64)
    alphas_cumprod = np.cos((x / timesteps + s) / (1 + s) * math.pi * 0.5) ** 2
    alphas_cumprod = alphas_cumprod / alphas_cumprod[0]
    betas = 1.0 - alphas_cumprod[1:] / alphas_cumprod[:-1]
    return np.clip(betas, 0.0, 0.999)


def linear_beta_schedule(timesteps):
    scale = 1000.0 / timesteps
    return np.linspace(scale * 0.0001, scale * 0.02, timesteps, dtype=np.float64)


# ----------------------------------- fused Pallas kernel ----------------------------------

def _p_losses_kernel(x_ref, noise_ref, scal_ref, cond_ref,
                     w_ref, wc_ref, tv_ref, b_ref, loss_ref):
    """Fused q_sample + (linear demo) denoiser + per-row MSE against the noise target."""
    # bf16 streams are upcast to f32 for the elementwise math (v5e's VPU has no bf16);
    # the cast cost is hidden under the DMA.
    x = x_ref[...].astype(jnp.float32)
    noise = noise_ref[...].astype(jnp.float32)

    scal = scal_ref[...]                 # (br, 3) f32: [sqrt_ac[t], sqrt_1m_ac[t], t/T]
    c1 = scal[:, 0:1]
    c2 = scal[:, 1:2]
    tf = scal[:, 2:3]

    # q_sample (f32)
    x_noisy = c1 * x + c2 * noise

    # demo denoiser model(x_noisy, t, cond): linear in all three inputs.
    # bf16 operands on the MXU, f32 accumulation.
    h = jnp.dot(x_noisy.astype(jnp.bfloat16), w_ref[...],
                preferred_element_type=jnp.float32)
    h = h + jnp.dot(cond_ref[...], wc_ref[...], preferred_element_type=jnp.float32)
    h = h + tf * tv_ref[...] + b_ref[...]

    # objective='pred_noise' -> target = noise; per-row mean squared error (f32).
    # Output last dim is 1: negligible traffic, so the masked store is irrelevant.
    err = h - noise
    loss_ref[...] = jnp.mean(err * err, axis=-1, keepdims=True)


def _round_up(a, b):
    return ((a + b - 1) // b) * b


def _vmem_limit_bytes():
    """Per-generation scoped-VMEM budget with headroom.

    ~64 MiB on v5e/v6e (128 MiB physical VMEM), ~48 MiB on v7x (64 MiB physical).
    """
    try:
        cap = int(pltpu.get_tpu_info().vmem_capacity_bytes)
    except Exception:
        cap = 64 * 1024 * 1024       # conservative fallback (v7x physical size)
    return int(min(cap * 3 // 4, 64 * 1024 * 1024))


def _pick_row_block(B, D, C, vmem_limit):
    """Row-block size: lane-padding aware, 16-sublane aligned, 256-aligned when large."""
    lane = 128
    dl = _round_up(max(D, 1), lane)      # physical (padded) lane width of x/noise tiles
    cl = _round_up(max(C, 1), lane)
    # Physical bytes of ONE pipeline buffer of the streamed rows:
    #   x + noise (bf16), cond (bf16), [c1,c2,t] (f32, 3->128 lanes), per-row loss (f32).
    row_bytes = 2 * (2 * dl) + 2 * cl + 4 * lane + 4 * lane
    # VMEM-resident constants (counted double-buffered, worst case).
    const_bytes = 2 * (2 * _round_up(D, 16) * dl          # W   bf16
                       + 2 * _round_up(max(C, 1), 16) * dl  # Wc  bf16
                       + 2 * 4 * 8 * dl)                   # tv, bias f32
    budget = max(vmem_limit // 2 - const_bytes, 1 << 20)
    br_cap = budget // (2 * row_bytes)                     # 2 pipeline buffers / stream
    if br_cap >= 256:
        br_cap = min(4096, (br_cap // 256) * 256)          # MXU-friendly (v6e/v7x 256x256)
    else:
        br_cap = max(16, (br_cap // 16) * 16)              # bf16 sublane packing minimum
    return int(min(br_cap, _round_up(B, 16)))


def fused_p_losses(x, noise, c1, c2, cond, tfeat, w, wc, tv, bias):
    """Per-row loss vector (shape (B,)) computed by one fused Pallas kernel.

    No host-side padding of the dominant streams: grid = cdiv(B, br) and Pallas
    masks the ragged boundary block; rows are independent so the unspecified
    out-of-bounds rows never contaminate valid outputs.
    """
    B, D = x.shape
    C = cond.shape[1]

    vmem_limit = _vmem_limit_bytes()
    br = _pick_row_block(B, D, C, vmem_limit)
    grid = (pl.cdiv(B, br),)

    # bf16-stream the dominant operands; keep the tiny per-row scalar features
    # (q_sample coefficients + t/T) in f32, merged into one (B, 3) side stream.
    x_b = x.astype(jnp.bfloat16)
    n_b = noise.astype(jnp.bfloat16)
    cond_b = cond.astype(jnp.bfloat16)
    scal = jnp.concatenate([c1, c2, tfeat], axis=1).astype(jnp.float32)   # (B, 3)
    w_b = w.astype(jnp.bfloat16)
    wc_b = wc.astype(jnp.bfloat16)
    tv_f = tv.astype(jnp.float32)
    b_f = bias.astype(jnp.float32)

    def build(single_buffer_consts):
        const_kw = ({"pipeline_mode": pl.Buffered(1)} if single_buffer_consts else {})
        return pl.pallas_call(
            _p_losses_kernel,
            out_shape=jax.ShapeDtypeStruct((B, 1), jnp.float32),
            grid_spec=pltpu.PrefetchScalarGridSpec(
                num_scalar_prefetch=0,
                grid=grid,
                in_specs=[
                    pl.BlockSpec((br, D), lambda i: (i, 0)),             # x        (bf16)
                    pl.BlockSpec((br, D), lambda i: (i, 0)),             # noise    (bf16)
                    pl.BlockSpec((br, 3), lambda i: (i, 0)),             # c1|c2|t  (f32)
                    pl.BlockSpec((br, C), lambda i: (i, 0)),             # cond     (bf16)
                    pl.BlockSpec((D, D), lambda i: (0, 0), **const_kw),  # W  (VMEM-resident)
                    pl.BlockSpec((C, D), lambda i: (0, 0), **const_kw),  # Wc (VMEM-resident)
                    pl.BlockSpec((1, D), lambda i: (0, 0), **const_kw),  # time vector (f32)
                    pl.BlockSpec((1, D), lambda i: (0, 0), **const_kw),  # bias        (f32)
                ],
                out_specs=pl.BlockSpec((br, 1), lambda i: (i, 0)),
            ),
            compiler_params=pltpu.CompilerParams(
                dimension_semantics=("parallel",),     # independent row blocks -> megacore
                vmem_limit_bytes=vmem_limit,
            ),
        )

    args = (x_b, n_b, scal, cond_b, w_b, wc_b, tv_f, b_f)
    try:
        per_row = build(True)(*args)
    except Exception:
        # pl.Buffered(1) single-buffering of the constant operands is an optimization
        # only; fall back to default double-buffered specs if this JAX build rejects it.
        per_row = build(False)(*args)
    return per_row[:, 0]


# ------------------------------------- module wrapper --------------------------------------

class CFGDiffusion:
    """JAX/Pallas port of CFGDiffusion's forward() / p_losses() training path."""

    def __init__(self, model_params, *, timesteps=1000, objective="pred_noise",
                 beta_schedule="cosine"):
        assert objective == "pred_noise"  # module default; target = noise
        if beta_schedule == "cosine":
            betas = cosine_beta_schedule(timesteps)
        elif beta_schedule == "linear":
            betas = linear_beta_schedule(timesteps)
        else:
            raise ValueError(f"unknown beta schedule {beta_schedule}")
        alphas_cumprod = np.cumprod(1.0 - betas)
        self.num_timesteps = int(timesteps)
        self.sqrt_alphas_cumprod = jnp.asarray(np.sqrt(alphas_cumprod), jnp.float32)
        self.sqrt_one_minus_alphas_cumprod = jnp.asarray(
            np.sqrt(1.0 - alphas_cumprod), jnp.float32)
        self.model_params = model_params  # (W, Wc, tv, b) of the demo linear denoiser

    def p_losses(self, x, t, cond, noise):
        c1 = self.sqrt_alphas_cumprod[t][:, None]
        c2 = self.sqrt_one_minus_alphas_cumprod[t][:, None]
        tfeat = (t.astype(jnp.float32) / float(self.num_timesteps))[:, None]
        w, wc, tv, bias = self.model_params
        per_row = fused_p_losses(x, noise, c1, c2, cond, tfeat, w, wc, tv, bias)
        return per_row.mean()

    def __call__(self, x, cond, key):
        b = x.shape[0]
        kt, kn = jax.random.split(key)
        t = jax.random.randint(kt, (b,), 0, self.num_timesteps, dtype=jnp.int32)
        noise = jax.random.normal(kn, x.shape, dtype=x.dtype)
        return self.p_losses(x, t, cond, noise)


# ----------------------------------------- demo --------------------------------------------

if __name__ == "__main__":
    key = jax.random.PRNGKey(0)
    kx, kc, kw, kwc, ktv, kb, kfwd = jax.random.split(key, 7)

    B, D, C = 2, 32, 4  # batch=2, input_dim=32, cond_dim=4 (forward takes 2-D x and cond)
    x = jax.random.normal(kx, (B, D), dtype=jnp.float32)
    cond = jax.random.normal(kc, (B, C), dtype=jnp.float32)

    # Deterministic demo denoiser parameters (linear model of x_noisy, t, cond).
    w = jax.random.normal(kw, (D, D), dtype=jnp.float32) * 0.1
    wc = jax.random.normal(kwc, (C, D), dtype=jnp.float32) * 0.1
    tv = jax.random.normal(ktv, (1, D), dtype=jnp.float32) * 0.1
    bias = jax.random.normal(kb, (1, D), dtype=jnp.float32) * 0.1

    diffusion = CFGDiffusion((w, wc, tv, bias), timesteps=1000)
    loss = diffusion(x, cond, kfwd)
    loss = jax.block_until_ready(loss)

    # Plain-JAX reference of the same forward pass (same t / noise draws, same
    # mixed-precision policy as the kernel: bf16 streams, f32 math / accumulation).
    kt, kn = jax.random.split(kfwd)
    t = jax.random.randint(kt, (B,), 0, diffusion.num_timesteps, dtype=jnp.int32)
    noise = jax.random.normal(kn, x.shape, dtype=x.dtype)
    c1 = diffusion.sqrt_alphas_cumprod[t][:, None]
    c2 = diffusion.sqrt_one_minus_alphas_cumprod[t][:, None]
    tfeat = (t.astype(jnp.float32) / float(diffusion.num_timesteps))[:, None]

    x_f = x.astype(jnp.bfloat16).astype(jnp.float32)
    n_f = noise.astype(jnp.bfloat16).astype(jnp.float32)
    x_noisy_bf = (c1 * x_f + c2 * n_f).astype(jnp.bfloat16)
    model_out = (jnp.dot(x_noisy_bf, w.astype(jnp.bfloat16),
                         preferred_element_type=jnp.float32)
                 + jnp.dot(cond.astype(jnp.bfloat16), wc.astype(jnp.bfloat16),
                           preferred_element_type=jnp.float32)
                 + tfeat * tv + bias)
    ref = jnp.mean(jnp.mean((model_out - n_f) ** 2, axis=-1))

    assert loss.shape == () and loss.dtype == jnp.float32
    assert jnp.allclose(loss, ref, atol=1e-4, rtol=1e-4)

    print("KERNEL_OK")
</pallas_src>

<mosaic_0001>
module attributes {stable_mosaic.version = 11 : i64} {
  func.func @_p_losses_kernel(%arg0: i32, %arg1: memref<16x32xbf16, #tpu.memory_space<vmem>>, %arg2: memref<16x32xbf16, #tpu.memory_space<vmem>>, %arg3: memref<16x3xf32, #tpu.memory_space<vmem>>, %arg4: memref<16x4xbf16, #tpu.memory_space<vmem>>, %arg5: memref<32x32xbf16, #tpu.memory_space<vmem>>, %arg6: memref<4x32xbf16, #tpu.memory_space<vmem>>, %arg7: memref<1x32xf32, #tpu.memory_space<vmem>>, %arg8: memref<1x32xf32, #tpu.memory_space<vmem>>, %arg9: memref<16x1xf32, #tpu.memory_space<vmem>>) attributes {dimension_semantics = [#tpu.dimension_semantics<parallel>], iteration_bounds = array<i64: 1>, scalar_prefetch = 0 : i64, scratch_operands = 0 : i64, tpu.core_type = #tpu.core_type<tc>, window_params = [{transform_indices = @transform_0, window_bounds = array<i64: 16, 32>}, {transform_indices = @transform_1, window_bounds = array<i64: 16, 32>}, {transform_indices = @transform_2, window_bounds = array<i64: 16, 3>}, {transform_indices = @transform_3, window_bounds = array<i64: 16, 4>}, {pipeline_mode = #tpu.pipeline_mode<synchronous>, transform_indices = @transform_4, window_bounds = array<i64: 32, 32>}, {pipeline_mode = #tpu.pipeline_mode<synchronous>, transform_indices = @transform_5, window_bounds = array<i64: 4, 32>}, {pipeline_mode = #tpu.pipeline_mode<synchronous>, transform_indices = @transform_6, window_bounds = array<i64: 1, 32>}, {pipeline_mode = #tpu.pipeline_mode<synchronous>, transform_indices = @transform_7, window_bounds = array<i64: 1, 32>}, {transform_indices = @transform_8, window_bounds = array<i64: 16, 1>}]} {
    %c0 = arith.constant 0 : index
    %c0_0 = arith.constant 0 : index
    %0 = vector.load %arg1[%c0, %c0_0] : memref<16x32xbf16, #tpu.memory_space<vmem>>, vector<16x32xbf16>
    %1 = arith.extf %0 : vector<16x32xbf16> to vector<16x32xf32>
    %c0_1 = arith.constant 0 : index
    %c0_2 = arith.constant 0 : index
    %2 = vector.load %arg2[%c0_1, %c0_2] : memref<16x32xbf16, #tpu.memory_space<vmem>>, vector<16x32xbf16>
    %3 = arith.extf %2 : vector<16x32xbf16> to vector<16x32xf32>
    %c0_3 = arith.constant 0 : index
    %c0_4 = arith.constant 0 : index
    %4 = vector.load %arg3[%c0_3, %c0_4] : memref<16x3xf32, #tpu.memory_space<vmem>>, vector<16x3xf32>
    %5 = vector.extract_strided_slice %4 {offsets = [0, 0], sizes = [16, 1], strides = [1, 1]} : vector<16x3xf32> to vector<16x1xf32>
    %6 = vector.extract_strided_slice %4 {offsets = [0, 1], sizes = [16, 1], strides = [1, 1]} : vector<16x3xf32> to vector<16x1xf32>
    %7 = vector.extract_strided_slice %4 {offsets = [0, 2], sizes = [16, 1], strides = [1, 1]} : vector<16x3xf32> to vector<16x1xf32>
    %8 = vector.broadcast %5 : vector<16x1xf32> to vector<16x32xf32>
    %9 = arith.mulf %8, %1 : vector<16x32xf32>
    %10 = vector.broadcast %6 : vector<16x1xf32> to vector<16x32xf32>
    %11 = arith.mulf %10, %3 : vector<16x32xf32>
    %12 = arith.addf %9, %11 : vector<16x32xf32>
    %13 = arith.truncf %12 : vector<16x32xf32> to vector<16x32xbf16>
    %c0_5 = arith.constant 0 : index
    %c0_6 = arith.constant 0 : index
    %14 = vector.load %arg5[%c0_5, %c0_6] : memref<32x32xbf16, #tpu.memory_space<vmem>>, vector<32x32xbf16>
    %cst = arith.constant dense<0.000000e+00> : vector<16x32xf32>
    %15 = tpu.matmul %13, %14, %cst {dimension_numbers = #tpu.dot_dimension_numbers<[1], [0], [0], [1], [0, 0, 1, 1], [], []>} : vector<16x32xbf16>, vector<32x32xbf16>, vector<16x32xf32> -> vector<16x32xf32>
    %c0_7 = arith.constant 0 : index
    %c0_8 = arith.constant 0 : index
    %16 = vector.load %arg4[%c0_7, %c0_8] : memref<16x4xbf16, #tpu.memory_space<vmem>>, vector<16x4xbf16>
    %c0_9 = arith.constant 0 : index
    %c0_10 = arith.constant 0 : index
    %17 = vector.load %arg6[%c0_9, %c0_10] : memref<4x32xbf16, #tpu.memory_space<vmem>>, vector<4x32xbf16>
    %cst_11 = arith.constant dense<0.000000e+00> : vector<16x32xf32>
    %18 = tpu.matmul %16, %17, %cst_11 {dimension_numbers = #tpu.dot_dimension_numbers<[1], [0], [0], [1], [0, 0, 1, 1], [], []>} : vector<16x4xbf16>, vector<4x32xbf16>, vector<16x32xf32> -> vector<16x32xf32>
    %19 = arith.addf %15, %18 : vector<16x32xf32>
    %c0_12 = arith.constant 0 : index
    %c0_13 = arith.constant 0 : index
    %20 = vector.load %arg7[%c0_12, %c0_13] : memref<1x32xf32, #tpu.memory_space<vmem>>, vector<1x32xf32>
    %21 = vector.broadcast %7 : vector<16x1xf32> to vector<16x32xf32>
    %22 = vector.broadcast %20 : vector<1x32xf32> to vector<16x32xf32>
    %23 = arith.mulf %21, %22 : vector<16x32xf32>
    %24 = arith.addf %19, %23 : vector<16x32xf32>
    %c0_14 = arith.constant 0 : index
    %c0_15 = arith.constant 0 : index
    %25 = vector.load %arg8[%c0_14, %c0_15] : memref<1x32xf32, #tpu.memory_space<vmem>>, vector<1x32xf32>
    %26 = vector.broadcast %25 : vector<1x32xf32> to vector<16x32xf32>
    %27 = arith.addf %24, %26 : vector<16x32xf32>
    %28 = arith.subf %27, %3 : vector<16x32xf32>
    %29 = arith.mulf %28, %28 : vector<16x32xf32>
    %cst_16 = arith.constant dense<0.000000e+00> : vector<16xf32>
    %30 = vector.multi_reduction <add>, %29, %cst_16 [1] : vector<16x32xf32> to vector<16xf32>
    %31 = vector.shape_cast %30 : vector<16xf32> to vector<16x1xf32>
    %cst_17 = arith.constant 3.200000e+01 : f32
    %32 = vector.broadcast %cst_17 : f32 to vector<16x1xf32>
    %33 = arith.divf %31, %32 : vector<16x1xf32>
    %c0_18 = arith.constant 0 : index
    %c0_19 = arith.constant 0 : index
    %34 = vector.load %arg9[%c0_18, %c0_19] : memref<16x1xf32, #tpu.memory_space<vmem>>, vector<16x1xf32>
    tpu.vector_store %arg9[%c0_18, %c0_19], %33 {strides = array<i32>} : memref<16x1xf32, #tpu.memory_space<vmem>>, vector<16x1xf32>,
    return
  }
  func.func @transform_0(%arg0: i32) -> (i32, i32) {
    %c0_i32 = arith.constant 0 : i32
    %c0_i32_0 = arith.constant 0 : i32
    return %arg0, %c0_i32 : i32, i32
  }
  func.func @transform_1(%arg0: i32) -> (i32, i32) {
    %c0_i32 = arith.constant 0 : i32
    %c0_i32_0 = arith.constant 0 : i32
    return %arg0, %c0_i32 : i32, i32
  }
  func.func @transform_2(%arg0: i32) -> (i32, i32) {
    %c0_i32 = arith.constant 0 : i32
    %c0_i32_0 = arith.constant 0 : i32
    return %arg0, %c0_i32 : i32, i32
  }
  func.func @transform_3(%arg0: i32) -> (i32, i32) {
    %c0_i32 = arith.constant 0 : i32
    %c0_i32_0 = arith.constant 0 : i32
    return %arg0, %c0_i32 : i32, i32
  }
  func.func @transform_4(%arg0: i32) -> (i32, i32) {
    %c0_i32 = arith.constant 0 : i32
    %c0_i32_0 = arith.constant 0 : i32
    %c0_i32_1 = arith.constant 0 : i32
    return %c0_i32, %c0_i32_0 : i32, i32
  }
  func.func @transform_5(%arg0: i32) -> (i32, i32) {
    %c0_i32 = arith.constant 0 : i32
    %c0_i32_0 = arith.constant 0 : i32
    %c0_i32_1 = arith.constant 0 : i32
    return %c0_i32, %c0_i32_0 : i32, i32
  }
  func.func @transform_6(%arg0: i32) -> (i32, i32) {
    %c0_i32 = arith.constant 0 : i32
    %c0_i32_0 = arith.constant 0 : i32
    %c0_i32_1 = arith.constant 0 : i32
    return %c0_i32, %c0_i32_0 : i32, i32
  }
  func.func @transform_7(%arg0: i32) -> (i32, i32) {
    %c0_i32 = arith.constant 0 : i32
    %c0_i32_0 = arith.constant 0 : i32
    %c0_i32_1 = arith.constant 0 : i32
    return %c0_i32, %c0_i32_0 : i32, i32
  }
  func.func @transform_8(%arg0: i32) -> (i32, i32) {
    %c0_i32 = arith.constant 0 : i32
    %c0_i32_0 = arith.constant 0 : i32
    return %arg0, %c0_i32 : i32, i32
  }
}

module attributes {stable_mosaic.version = 11 : i64} {
  func.func @_p_losses_kernel(%arg0: i32, %arg1: memref<16x32xbf16, #tpu.memory_space<vmem>>, %arg2: memref<16x32xbf16, #tpu.memory_space<vmem>>, %arg3: memref<16x3xf32, #tpu.memory_space<vmem>>, %arg4: memref<16x4xbf16, #tpu.memory_space<vmem>>, %arg5: memref<32x32xbf16, #tpu.memory_space<vmem>>, %arg6: memref<4x32xbf16, #tpu.memory_space<vmem>>, %arg7: memref<1x32xf32, #tpu.memory_space<vmem>>, %arg8: memref<1x32xf32, #tpu.memory_space<vmem>>, %arg9: memref<16x1xf32, #tpu.memory_space<vmem>>) attributes {dimension_semantics = [#tpu.dimension_semantics<parallel>], iteration_bounds = array<i64: 1>, scalar_prefetch = 0 : i64, scratch_operands = 0 : i64, tpu.core_type = #tpu.core_type<tc>, window_params = [{transform_indices = @transform_0, window_bounds = array<i64: 16, 32>}, {transform_indices = @transform_1, window_bounds = array<i64: 16, 32>}, {transform_indices = @transform_2, window_bounds = array<i64: 16, 3>}, {transform_indices = @transform_3, window_bounds = array<i64: 16, 4>}, {pipeline_mode = #tpu.pipeline_mode<synchronous>, transform_indices = @transform_4, window_bounds = array<i64: 32, 32>}, {pipeline_mode = #tpu.pipeline_mode<synchronous>, transform_indices = @transform_5, window_bounds = array<i64: 4, 32>}, {pipeline_mode = #tpu.pipeline_mode<synchronous>, transform_indices = @transform_6, window_bounds = array<i64: 1, 32>}, {pipeline_mode = #tpu.pipeline_mode<synchronous>, transform_indices = @transform_7, window_bounds = array<i64: 1, 32>}, {transform_indices = @transform_8, window_bounds = array<i64: 16, 1>}]} {
    %c0 = arith.constant 0 : index
    %c0_0 = arith.constant 0 : index
    %0 = vector.load %arg1[%c0, %c0_0] : memref<16x32xbf16, #tpu.memory_space<vmem>>, vector<16x32xbf16>
    %1 = arith.extf %0 : vector<16x32xbf16> to vector<16x32xf32>
    %c0_1 = arith.constant 0 : index
    %c0_2 = arith.constant 0 : index
    %2 = vector.load %arg2[%c0_1, %c0_2] : memref<16x32xbf16, #tpu.memory_space<vmem>>, vector<16x32xbf16>
    %3 = arith.extf %2 : vector<16x32xbf16> to vector<16x32xf32>
    %c0_3 = arith.constant 0 : index
    %c0_4 = arith.constant 0 : index
    %4 = vector.load %arg3[%c0_3, %c0_4] : memref<16x3xf32, #tpu.memory_space<vmem>>, vector<16x3xf32>
    %5 = vector.extract_strided_slice %4 {offsets = [0, 0], sizes = [16, 1], strides = [1, 1]} : vector<16x3xf32> to vector<16x1xf32>
    %6 = vector.extract_strided_slice %4 {offsets = [0, 1], sizes = [16, 1], strides = [1, 1]} : vector<16x3xf32> to vector<16x1xf32>
    %7 = vector.extract_strided_slice %4 {offsets = [0, 2], sizes = [16, 1], strides = [1, 1]} : vector<16x3xf32> to vector<16x1xf32>
    %8 = vector.broadcast %5 : vector<16x1xf32> to vector<16x32xf32>
    %9 = arith.mulf %8, %1 : vector<16x32xf32>
    %10 = vector.broadcast %6 : vector<16x1xf32> to vector<16x32xf32>
    %11 = arith.mulf %10, %3 : vector<16x32xf32>
    %12 = arith.addf %9, %11 : vector<16x32xf32>
    %13 = arith.truncf %12 : vector<16x32xf32> to vector<16x32xbf16>
    %c0_5 = arith.constant 0 : index
    %c0_6 = arith.constant 0 : index
    %14 = vector.load %arg5[%c0_5, %c0_6] : memref<32x32xbf16, #tpu.memory_space<vmem>>, vector<32x32xbf16>
    %cst = arith.constant dense<0.000000e+00> : vector<16x32xf32>
    %15 = tpu.matmul %13, %14, %cst {dimension_numbers = #tpu.dot_dimension_numbers<[1], [0], [0], [1], [0, 0, 1, 1], [], []>} : vector<16x32xbf16>, vector<32x32xbf16>, vector<16x32xf32> -> vector<16x32xf32>
    %c0_7 = arith.constant 0 : index
    %c0_8 = arith.constant 0 : index
    %16 = vector.load %arg4[%c0_7, %c0_8] : memref<16x4xbf16, #tpu.memory_space<vmem>>, vector<16x4xbf16>
    %c0_9 = arith.constant 0 : index
    %c0_10 = arith.constant 0 : index
    %17 = vector.load %arg6[%c0_9, %c0_10] : memref<4x32xbf16, #tpu.memory_space<vmem>>, vector<4x32xbf16>
    %cst_11 = arith.constant dense<0.000000e+00> : vector<16x32xf32>
    %18 = tpu.matmul %16, %17, %cst_11 {dimension_numbers = #tpu.dot_dimension_numbers<[1], [0], [0], [1], [0, 0, 1, 1], [], []>} : vector<16x4xbf16>, vector<4x32xbf16>, vector<16x32xf32> -> vector<16x32xf32>
    %19 = arith.addf %15, %18 : vector<16x32xf32>
    %c0_12 = arith.constant 0 : index
    %c0_13 = arith.constant 0 : index
    %20 = vector.load %arg7[%c0_12, %c0_13] : memref<1x32xf32, #tpu.memory_space<vmem>>, vector<1x32xf32>
    %21 = vector.broadcast %7 : vector<16x1xf32> to vector<16x32xf32>
    %22 = vector.broadcast %20 : vector<1x32xf32> to vector<16x32xf32>
    %23 = arith.mulf %21, %22 : vector<16x32xf32>
    %24 = arith.addf %19, %23 : vector<16x32xf32>
    %c0_14 = arith.constant 0 : index
    %c0_15 = arith.constant 0 : index
    %25 = vector.load %arg8[%c0_14, %c0_15] : memref<1x32xf32, #tpu.memory_space<vmem>>, vector<1x32xf32>
    %26 = vector.broadcast %25 : vector<1x32xf32> to vector<16x32xf32>
    %27 = arith.addf %24, %26 : vector<16x32xf32>
    %28 = arith.subf %27, %3 : vector<16x32xf32>
    %29 = arith.mulf %28, %28 : vector<16x32xf32>
    %cst_16 = arith.constant dense<0.000000e+00> : vector<16xf32>
    %30 = vector.multi_reduction <add>, %29, %cst_16 [1] : vector<16x32xf32> to vector<16xf32>
    %31 = vector.shape_cast %30 : vector<16xf32> to vector<16x1xf32>
    %cst_17 = arith.constant 3.200000e+01 : f32
    %32 = vector.broadcast %cst_17 : f32 to vector<16x1xf32>
    %33 = arith.divf %31, %32 : vector<16x1xf32>
    %c0_18 = arith.constant 0 : index
    %c0_19 = arith.constant 0 : index
    %34 = vector.load %arg9[%c0_18, %c0_19] : memref<16x1xf32, #tpu.memory_space<vmem>>, vector<16x1xf32>
    tpu.vector_store %arg9[%c0_18, %c0_19], %33 {strides = array<i32>} : memref<16x1xf32, #tpu.memory_space<vmem>>, vector<16x1xf32>,
    return
  }
  func.func @transform_0(%arg0: i32) -> (i32, i32) {
    %c0_i32 = arith.constant 0 : i32
    %c0_i32_0 = arith.constant 0 : i32
    return %arg0, %c0_i32 : i32, i32
  }
  func.func @transform_1(%arg0: i32) -> (i32, i32) {
    %c0_i32 = arith.constant 0 : i32
    %c0_i32_0 = arith.constant 0 : i32
    return %arg0, %c0_i32 : i32, i32
  }
  func.func @transform_2(%arg0: i32) -> (i32, i32) {
    %c0_i32 = arith.constant 0 : i32
    %c0_i32_0 = arith.constant 0 : i32
    return %arg0, %c0_i32 : i32, i32
  }
  func.func @transform_3(%arg0: i32) -> (i32, i32) {
    %c0_i32 = arith.constant 0 : i32
    %c0_i32_0 = arith.constant 0 : i32
    return %arg0, %c0_i32 : i32, i32
  }
  func.func @transform_4(%arg0: i32) -> (i32, i32) {
    %c0_i32 = arith.constant 0 : i32
    %c0_i32_0 = arith.constant 0 : i32
    %c0_i32_1 = arith.constant 0 : i32
    return %c0_i32, %c0_i32_0 : i32, i32
  }
  func.func @transform_5(%arg0: i32) -> (i32, i32) {
    %c0_i32 = arith.constant 0 : i32
    %c0_i32_0 = arith.constant 0 : i32
    %c0_i32_1 = arith.constant 0 : i32
    return %c0_i32, %c0_i32_0 : i32, i32
  }
  func.func @transform_6(%arg0: i32) -> (i32, i32) {
    %c0_i32 = arith.constant 0 : i32
    %c0_i32_0 = arith.constant 0 : i32
    %c0_i32_1 = arith.constant 0 : i32
    return %c0_i32, %c0_i32_0 : i32, i32
  }
  func.func @transform_7(%arg0: i32) -> (i32, i32) {
    %c0_i32 = arith.constant 0 : i32
    %c0_i32_0 = arith.constant 0 : i32
    %c0_i32_1 = arith.constant 0 : i32
    return %c0_i32, %c0_i32_0 : i32, i32
  }
  func.func @transform_8(%arg0: i32) -> (i32, i32) {
    %c0_i32 = arith.constant 0 : i32
    %c0_i32_0 = arith.constant 0 : i32
    return %arg0, %c0_i32 : i32, i32
  }
}

</mosaic_0001>

<llo_original>
// kernel: tpu_custom_call.1
$region0: #{tpu_custom_call.1}
  #allocation0 [shape = 'u32[]', space=smem, size = 0x4, offset = 0x4, fixed_abs, tag = 'smem constant byte address 0x4 - core index']
  #allocation1 [shape = 'u32[144,128]{1,0:T(1,128)}', space=vmem, size = 0x12000, scoped, tag = 'internal scratch']
  %s0 = inlined_call_operand.hbm [shape: bf16[2,32], index: 0, kind: input, shape index: {}]
  %s1 = inlined_call_operand.vmem [shape: bf16[2,32], index: 1, kind: input, shape index: {}]
  %s2 = inlined_call_operand.vmem [shape: f32[2,3], index: 2, kind: input, shape index: {}]
  %s3 = inlined_call_operand.vmem [shape: bf16[2,4], index: 3, kind: input, shape index: {}]
  %s4 = inlined_call_operand.hbm [shape: bf16[32,32], index: 4, kind: input, shape index: {}]
  %s5 = inlined_call_operand.vmem [shape: bf16[4,32], index: 5, kind: input, shape index: {}]
  %s6 = inlined_call_operand.vmem [shape: f32[1,32], index: 6, kind: input, shape index: {}]
  %s7 = inlined_call_operand.vmem [shape: f32[1,32], index: 7, kind: input, shape index: {}]
  %s8 = inlined_call_operand.vmem [shape: f32[2,1], index: 8, kind: output, shape index: {}]
  %s9 = sld [smem:[#allocation0]]
  $region80: #{tpu_custom_call.1} parent=0
    _
  %s11 = ssub.s32 1, %s9
  %s12 = scalar_select 0, %s11, %s9
  $region1: #{tpu_custom_call.1} parent=0
    #allocation2 [shape = 'u8[4096]{0}', space=vmem, size = 0x1000, scoped, tag = 'input window, operand 0, single buffered']
    #allocation3 [shape = 's32[1]{0}', space=sflag, size = 0x4, scoped, tag = 'scoped memory for tpu_custom_call.1']
    #allocation4 [shape = 'u8[8192]{0}', space=vmem, size = 0x2000, scoped, tag = 'input window, operand 4, single buffered']
    #allocation5 [shape = 's32[1]{0}', space=sflag, size = 0x4, scoped, tag = 'scoped memory for tpu_custom_call.1']
    #allocation6 [shape = 'u8[8192]{0}', space=vmem, size = 0x2000, scoped, tag = 'output window, operand 0, single buffered']
    %13 = vsyncpa [#allocation3], 0
    %14 = vsyncpa [#allocation5], 0
    // Predicated region
    $region2: #{tpu_custom_call.1} parent=1 // pred_check
      _
    $region3: #{tpu_custom_call.1} parent=1 // pred_check_branch
      %16 = sbr.rel (0) target = $region5
    $region4: #{tpu_custom_call.1} parent=1 // pred_region
      %s18 = ssub.s32 128, 16
      %19 = vsyncadd [#allocation3], %s18
      %s20 = sshll.u32 [#allocation2], 4
      %s21 = int_to_ptr.vmem [resolvable:$true] %s20
      %26 = dma.hbm_to_vmem [thread:$0]  %s0, 16, %s21, [#allocation3], 16, 16, 1
    $region5: #{tpu_custom_call.1} parent=1 // pred_fallthru
      _
    // Predicated region
    $region6: #{tpu_custom_call.1} parent=1 // pred_check
      _
    $region7: #{tpu_custom_call.1} parent=1 // pred_check_branch
      %28 = sbr.rel (0) target = $region9
    $region8: #{tpu_custom_call.1} parent=1 // pred_region
      _
    $region9: #{tpu_custom_call.1} parent=1 // pred_fallthru
      _
    // Predicated region
    $region10: #{tpu_custom_call.1} parent=1 // pred_check
      _
    $region11: #{tpu_custom_call.1} parent=1 // pred_check_branch
      %30 = sbr.rel (0) target = $region13
    $region12: #{tpu_custom_call.1} parent=1 // pred_region
      _
    $region13: #{tpu_custom_call.1} parent=1 // pred_fallthru
      _
    // Predicated region
    $region14: #{tpu_custom_call.1} parent=1 // pred_check
      _
    $region15: #{tpu_custom_call.1} parent=1 // pred_check_branch
      %32 = sbr.rel (0) target = $region17
    $region16: #{tpu_custom_call.1} parent=1 // pred_region
      _
    $region17: #{tpu_custom_call.1} parent=1 // pred_fallthru
      _
    // Predicated region
    $region18: #{tpu_custom_call.1} parent=1 // pred_check
      _
    $region19: #{tpu_custom_call.1} parent=1 // pred_check_branch
      %34 = sbr.rel (0) target = $region21
    $region20: #{tpu_custom_call.1} parent=1 // pred_region
      %s36 = ssub.s32 256, 256
      %37 = vsyncadd [#allocation5], %s36
      %s38 = sshll.u32 [#allocation4], 4
      %s39 = int_to_ptr.vmem [resolvable:$true] %s38
      %44 = dma.hbm_to_vmem [thread:$0]  %s4, 256, %s39, [#allocation5], 64, 64, 4
    $region21: #{tpu_custom_call.1} parent=1 // pred_fallthru
      _
    // Predicated region
    $region22: #{tpu_custom_call.1} parent=1 // pred_check
      _
    $region23: #{tpu_custom_call.1} parent=1 // pred_check_branch
      %46 = sbr.rel (0) target = $region25
    $region24: #{tpu_custom_call.1} parent=1 // pred_region
      _
    $region25: #{tpu_custom_call.1} parent=1 // pred_fallthru
      _
    // Predicated region
    $region26: #{tpu_custom_call.1} parent=1 // pred_check
      _
    $region27: #{tpu_custom_call.1} parent=1 // pred_check_branch
      %48 = sbr.rel (0) target = $region29
    $region28: #{tpu_custom_call.1} parent=1 // pred_region
      _
    $region29: #{tpu_custom_call.1} parent=1 // pred_fallthru
      _
    // Predicated region
    $region30: #{tpu_custom_call.1} parent=1 // pred_check
      _
    $region31: #{tpu_custom_call.1} parent=1 // pred_check_branch
      %50 = sbr.rel (0) target = $region33
    $region32: #{tpu_custom_call.1} parent=1 // pred_region
      _
    $region33: #{tpu_custom_call.1} parent=1 // pred_fallthru
      _
    // Predicated region
    $region34: #{tpu_custom_call.1} parent=1 // pred_check
      _
    $region35: #{tpu_custom_call.1} parent=1 // pred_check_branch
      %52 = sbr.rel (0) target = $region37
    $region36: #{tpu_custom_call.1} parent=1 // pred_region
      %53 = dma.done [#allocation3], 128
    $region37: #{tpu_custom_call.1} parent=1 // pred_fallthru
      _
    // Predicated region
    $region38: #{tpu_custom_call.1} parent=1 // pred_check
      _
    $region39: #{tpu_custom_call.1} parent=1 // pred_check_branch
      %55 = sbr.rel (0) target = $region41
    $region40: #{tpu_custom_call.1} parent=1 // pred_region
      %56 = dma.done [#allocation5], 256
    $region41: #{tpu_custom_call.1} parent=1 // pred_fallthru
      _
    %v58 = vld [vmem:[#allocation2] sm:$0x1]
    %v59 = vld [vmem:[#allocation2 + $0x1] sm:$0x1]
    %v60 = vld [vmem:[#allocation2 + $0x2] sm:$0x1]
    %v61 = vld [vmem:[#allocation2 + $0x3] sm:$0x1]
    %v62 = vld [vmem:[#allocation2 + $0x4] sm:$0x1]
    %v63 = vld [vmem:[#allocation2 + $0x5] sm:$0x1]
    %v64 = vld [vmem:[#allocation2 + $0x6] sm:$0x1]
    %v65 = vld [vmem:[#allocation2 + $0x7] sm:$0x1]
    %v66 = vunpack.c.l.bf16 %v58
    %v67 = vunpack.c.l.bf16 %v59
    %v68 = vunpack.c.l.bf16 %v60
    %v69 = vunpack.c.l.bf16 %v61
    %v70 = vunpack.c.l.bf16 %v62
    %v71 = vunpack.c.l.bf16 %v63
    %v72 = vunpack.c.l.bf16 %v64
    %v73 = vunpack.c.l.bf16 %v65
    %v74 = vld [vmem:[%s1] sm:$0x1]
    %v75 = vld [vmem:[%s1 + $0x1] sm:$0x1]
    %v76 = vld [vmem:[%s1 + $0x2] sm:$0x1]
    %v77 = vld [vmem:[%s1 + $0x3] sm:$0x1]
    %v78 = vld [vmem:[%s1 + $0x4] sm:$0x1]
    %v79 = vld [vmem:[%s1 + $0x5] sm:$0x1]
    %v80 = vld [vmem:[%s1 + $0x6] sm:$0x1]
    %v81 = vld [vmem:[%s1 + $0x7] sm:$0x1]
    %v82 = vunpack.c.l.bf16 %v74
    %v83 = vunpack.c.l.bf16 %v75
    %v84 = vunpack.c.l.bf16 %v76
    %v85 = vunpack.c.l.bf16 %v77
    %v86 = vunpack.c.l.bf16 %v78
    %v87 = vunpack.c.l.bf16 %v79
    %v88 = vunpack.c.l.bf16 %v80
    %v89 = vunpack.c.l.bf16 %v81
    %v90 = vld [vmem:[%s2] sm:$0xff]
    %v91 = vld [vmem:[%s2 + $0x8] sm:$0xff]
    %93 = vset.pattern.permute.xlu0 0
    %94 = vperm.xlu0 %93, %v90
    %v95 = vpop.permute.xlu0 %94
    %98 = vset.pattern.permute.xlu0 0
    %99 = vperm.xlu0 %98, %v91
    %v100 = vpop.permute.xlu0 %99
    %v110 = vcombine.low %v66, %v67
    %v111 = vcombine.low %v68, %v69
    %v113 = vunpack.c.l.s4 1983009808
    %v114 = vunpack.c.0.s8 %v113
    %v115 = vlaneseq
    %v116 = vshrl.u32 %v115, 7
    %v117 = vsub.s32 %v114, %v116
    %v118 = vrot.slane %v110, %v117
    %v120 = vunpack.c.l.s4 1983009808
    %v121 = vunpack.c.0.s8 %v120
    %v122 = vlaneseq
    %v123 = vshrl.u32 %v122, 7
    %v124 = vsub.s32 %v121, %v123
    %v125 = vrot.slane %v111, %v124
    %v126 = vcombine.low %v118, %v125
    %v127 = vcombine.low %v70, %v71
    %v128 = vcombine.low %v72, %v73
    %v130 = vunpack.c.l.s4 1983009808
    %v131 = vunpack.c.0.s8 %v130
    %v132 = vlaneseq
    %v133 = vshrl.u32 %v132, 7
    %v134 = vsub.s32 %v131, %v133
    %v135 = vrot.slane %v127, %v134
    %v137 = vunpack.c.l.s4 1983009808
    %v138 = vunpack.c.0.s8 %v137
    %v139 = vlaneseq
    %v140 = vshrl.u32 %v139, 7
    %v141 = vsub.s32 %v138, %v140
    %v142 = vrot.slane %v128, %v141
    %v143 = vcombine.low %v135, %v142
    %v146 = vmul.f32 %v95, %v126
    %v147 = vmul.f32 %v100, %v143
    %148 = vset.pattern.permute.xlu0 1
    %149 = vperm.xlu0 %148, %v90
    %v150 = vpop.permute.xlu0 %149
    %152 = vset.pattern.permute.xlu0 1
    %153 = vperm.xlu0 %152, %v91
    %v154 = vpop.permute.xlu0 %153
    %v164 = vcombine.low %v82, %v83
    %v165 = vcombine.low %v84, %v85
    %v167 = vunpack.c.l.s4 1983009808
    %v168 = vunpack.c.0.s8 %v167
    %v169 = vlaneseq
    %v170 = vshrl.u32 %v169, 7
    %v171 = vsub.s32 %v168, %v170
    %v172 = vrot.slane %v164, %v171
    %v174 = vunpack.c.l.s4 1983009808
    %v175 = vunpack.c.0.s8 %v174
    %v176 = vlaneseq
    %v177 = vshrl.u32 %v176, 7
    %v178 = vsub.s32 %v175, %v177
    %v179 = vrot.slane %v165, %v178
    %v180 = vcombine.low %v172, %v179
    %v181 = vcombine.low %v86, %v87
    %v182 = vcombine.low %v88, %v89
    %v184 = vunpack.c.l.s4 1983009808
    %v185 = vunpack.c.0.s8 %v184
    %v186 = vlaneseq
    %v187 = vshrl.u32 %v186, 7
    %v188 = vsub.s32 %v185, %v187
    %v189 = vrot.slane %v181, %v188
    %v191 = vunpack.c.l.s4 1983009808
    %v192 = vunpack.c.0.s8 %v191
    %v193 = vlaneseq
    %v194 = vshrl.u32 %v193, 7
    %v195 = vsub.s32 %v192, %v194
    %v196 = vrot.slane %v182, %v195
    %v197 = vcombine.low %v189, %v196
    %v200 = vmul.f32 %v150, %v180
    %v201 = vmul.f32 %v154, %v197
    %v202 = vadd.f32 %v146, %v200
    %v203 = vadd.f32 %v147, %v201
    %v204 = vpack.c.bf16 %v203, %v202
    %v205 = vld [vmem:[#allocation4] sm:$0xf]
    %v206 = vld [vmem:[#allocation4 + $0x4] sm:$0xf]
    %v207 = vld [vmem:[#allocation4 + $0x8] sm:$0xf]
    %v208 = vld [vmem:[#allocation4 + $0xc] sm:$0xf]
    %v209 = vld [vmem:[%s3] sm:$0x1]
    %v210 = vld [vmem:[%s3 + $0x1] sm:$0x1]
    %v211 = vld [vmem:[%s3 + $0x2] sm:$0x1]
    %v212 = vld [vmem:[%s3 + $0x3] sm:$0x1]
    %v213 = vld [vmem:[%s3 + $0x4] sm:$0x1]
    %v214 = vld [vmem:[%s3 + $0x5] sm:$0x1]
    %v215 = vld [vmem:[%s3 + $0x6] sm:$0x1]
    %v216 = vld [vmem:[%s3 + $0x7] sm:$0x1]
    %v217 = vld [vmem:[%s5] sm:$0x3]
    %v226 = vcombine.low %v209, %v210
    %v227 = vcombine.low %v211, %v212
    %v228 = vcombine.low %v213, %v214
    %v229 = vcombine.low %v215, %v216
    %v231 = vunpack.c.l.s4 1966171168
    %v232 = vunpack.c.0.s8 %v231
    %v233 = vlaneseq
    %v234 = vshrl.u32 %v233, 7
    %v235 = vsub.s32 %v232, %v234
    %v236 = vrot.slane %v226, %v235
    %v238 = vunpack.c.l.s4 1966171168
    %v239 = vunpack.c.0.s8 %v238
    %v240 = vlaneseq
    %v241 = vshrl.u32 %v240, 7
    %v242 = vsub.s32 %v239, %v241
    %v243 = vrot.slane %v227, %v242
    %v245 = vunpack.c.l.s4 1966171168
    %v246 = vunpack.c.0.s8 %v245
    %v247 = vlaneseq
    %v248 = vshrl.u32 %v247, 7
    %v249 = vsub.s32 %v246, %v248
    %v250 = vrot.slane %v228, %v249
    %v252 = vunpack.c.l.s4 1966171168
    %v253 = vunpack.c.0.s8 %v252
    %v254 = vlaneseq
    %v255 = vshrl.u32 %v254, 7
    %v256 = vsub.s32 %v253, %v255
    %v257 = vrot.slane %v229, %v256
    %v258 = vcombine.low %v236, %v243
    %v259 = vcombine.low %v250, %v257
    %v261 = vunpack.c.l.s4 1966171168
    %v262 = vunpack.c.0.s8 %v261
    %v263 = vlaneseq
    %v264 = vshrl.u32 %v263, 7
    %v265 = vsub.s32 %v262, %v264
    %v266 = vrot.slane %v258, %v265
    %v268 = vunpack.c.l.s4 1966171168
    %v269 = vunpack.c.0.s8 %v268
    %v270 = vlaneseq
    %v271 = vshrl.u32 %v270, 7
    %v272 = vsub.s32 %v269, %v271
    %v273 = vrot.slane %v259, %v272
    %v274 = vcombine.low %v266, %v273
    %vm275 = vcmask 31744
    %v277 = vsel %vm275, %v274, 0
    %vm279 = vcmask 1041408
    %v281 = vsel %vm279, %v217, 0
    %283 = vmatprep.subr.bf16.mxu0 0
    %284 = vmatpush1.bf16.msra.mxu0 %v281
    %285 = vmatprep.subr.bf16.mxu0 0
    %286 = vmatpush1.bf16.msra.mxu0 0
    %287 = vmatprep.subr.bf16.mxu0 0
    %288 = vmatpush1.bf16.msra.mxu0 0
    %289 = vmatprep.subr.bf16.mxu0 0
    %290 = vmatpush1.bf16.msra.mxu0 0
    %291 = vmatprep.subr.bf16.mxu0 0
    %292 = vmatpush1.bf16.msra.mxu0 0
    %293 = vmatprep.subr.bf16.mxu0 0
    %294 = vmatpush1.bf16.msra.mxu0 0
    %295 = vmatprep.subr.bf16.mxu0 0
    %296 = vmatpush1.bf16.msra.mxu0 0
    %297 = vmatprep.subr.bf16.mxu0 0
    %298 = vmatpush1.bf16.msra.mxu0 0
    %299 = vmatprep.subr.bf16.mxu0 0
    %300 = vmatpush1.bf16.msra.mxu0 0
    %301 = vmatprep.subr.bf16.mxu0 0
    %302 = vmatpush1.bf16.msra.mxu0 0
    %303 = vmatprep.subr.bf16.mxu0 0
    %304 = vmatpush1.bf16.msra.mxu0 0
    %305 = vmatprep.subr.bf16.mxu0 0
    %306 = vmatpush1.bf16.msra.mxu0 0
    %307 = vmatprep.subr.bf16.mxu0 0
    %308 = vmatpush1.bf16.msra.mxu0 0
    %309 = vmatprep.subr.bf16.mxu0 0
    %310 = vmatpush1.bf16.msra.mxu0 0
    %311 = vmatprep.subr.bf16.mxu0 0
    %312 = vmatpush1.bf16.msra.mxu0 0
    %313 = vmatprep.subr.bf16.mxu0 0
    %314 = vmatpush1.bf16.msra.mxu0 0
    %315 = vmatprep.mubr.bf16.mxu0 0
    %316 = vmatmul.mubr.bf16.gmra.mrb[0].mxu0 %v277
    %v317 = vpop.f32.mrb[0].mxu0
    %v318 = vadd.f32 0.0, %v317
    %v319 = vpop.f32.mrb[0].mxu0
    %v320 = vpop.f32.mrb[0].mxu0
    %v321 = vadd.f32 0.0, %v320
    %v322 = vpop.f32.mrb[0].mxu0
    %323 = vdwg.mxu0
    %v328 = vunpack.c.l.b16 %v205
    %v329 = vunpack.c.l.b16 %v206
    %v330 = vunpack.c.l.b16 %v207
    %v331 = vunpack.c.l.b16 %v208
    %v332 = vpack.c.b16 %v329, %v328
    %v333 = vpack.c.b16 %v331, %v330
    %vm336 = vcmask 261120
    %v338 = vsel %vm336, %v204, 0
    %340 = vmatprep.subr.bf16.mxu0 0
    %341 = vmatpush1.bf16.msra.mxu0 %v332
    %342 = vmatprep.subr.bf16.mxu0 0
    %343 = vmatpush1.bf16.msra.mxu0 %v333
    %344 = vmatprep.subr.bf16.mxu0 0
    %345 = vmatpush1.bf16.msra.mxu0 0
    %346 = vmatprep.subr.bf16.mxu0 0
    %347 = vmatpush1.bf16.msra.mxu0 0
    %348 = vmatprep.subr.bf16.mxu0 0
    %349 = vmatpush1.bf16.msra.mxu0 0
    %350 = vmatprep.subr.bf16.mxu0 0
    %351 = vmatpush1.bf16.msra.mxu0 0
    %352 = vmatprep.subr.bf16.mxu0 0
    %353 = vmatpush1.bf16.msra.mxu0 0
    %354 = vmatprep.subr.bf16.mxu0 0
    %355 = vmatpush1.bf16.msra.mxu0 0
    %356 = vmatprep.subr.bf16.mxu0 0
    %357 = vmatpush1.bf16.msra.mxu0 0
    %358 = vmatprep.subr.bf16.mxu0 0
    %359 = vmatpush1.bf16.msra.mxu0 0
    %360 = vmatprep.subr.bf16.mxu0 0
    %361 = vmatpush1.bf16.msra.mxu0 0
    %362 = vmatprep.subr.bf16.mxu0 0
    %363 = vmatpush1.bf16.msra.mxu0 0
    %364 = vmatprep.subr.bf16.mxu0 0
    %365 = vmatpush1.bf16.msra.mxu0 0
    %366 = vmatprep.subr.bf16.mxu0 0
    %367 = vmatpush1.bf16.msra.mxu0 0
    %368 = vmatprep.subr.bf16.mxu0 0
    %369 = vmatpush1.bf16.msra.mxu0 0
    %370 = vmatprep.subr.bf16.mxu0 0
    %371 = vmatpush1.bf16.msra.mxu0 0
    %372 = vmatprep.mubr.bf16.mxu0 0
    %373 = vmatmul.mubr.bf16.gmra.mrb[0].mxu0 %v338
    %v374 = vpop.f32.mrb[0].mxu0
    %v375 = vadd.f32 %v318, %v374
    %v376 = vpop.f32.mrb[0].mxu0
    %v377 = vpop.f32.mrb[0].mxu0
    %v378 = vadd.f32 %v321, %v377
    %v379 = vpop.f32.mrb[0].mxu0
    %380 = vdwg.mxu0
    %v381 = vld [vmem:[%s6] sm:$0x1]
    %382 = vset.pattern.permute.xlu0 2
    %383 = vperm.xlu0 %382, %v90
    %v384 = vpop.permute.xlu0 %383
    %386 = vset.pattern.permute.xlu0 2
    %387 = vperm.xlu0 %386, %v91
    %v388 = vpop.permute.xlu0 %387
    %v391 = vlaneseq
    %v392 = vshrl.u32 %v391, 7
    %v393 = vsub.s32 0, %v392
    %v394 = vrot.slane %v381, %v393
    %v396 = vmul.f32 %v384, %v394
    %v397 = vmul.f32 %v388, %v394
    %v398 = vadd.f32 %v375, %v396
    %v399 = vadd.f32 %v378, %v397
    %v400 = vld [vmem:[%s7] sm:$0x1]
    %v402 = vlaneseq
    %v403 = vshrl.u32 %v402, 7
    %v404 = vsub.s32 0, %v403
    %v405 = vrot.slane %v400, %v404
    %v407 = vadd.f32 %v398, %v405
    %v408 = vadd.f32 %v399, %v405
    %v409 = vsub.f32 %v407, %v180
    %v410 = vsub.f32 %v408, %v197
    %v411 = vmul.f32 %v409, %v409
    %v412 = vmul.f32 %v410, %v410
    %v413 = vsel %vm336, %v411, 0.0
    %414 = vadd.xlane.f32.xlu0 %v413
    %v415 = vpop.xlane.xlu0 %414
    %v416 = vsel %vm336, %v412, 0.0
    %417 = vadd.xlane.f32.xlu0 %v416
    %v418 = vpop.xlane.xlu0 %417
    %v419 = vrcp.pop 32.0
    %v420 = vmul.f32 %v415, %v419
    %v421 = vmul.f32 %v418, %v419
    %vm422 = vcmask 7168
    %423 = vst.msk [vmem:[#allocation6] sm:$0xff] %vm422, %v420
    %424 = vst.msk [vmem:[#allocation6 + $0x8] sm:$0xff] %vm422, %v421
    // Predicated region
    $region42: #{tpu_custom_call.1} parent=1 // pred_check
      _
    $region43: #{tpu_custom_call.1} parent=1 // pred_check_branch
      %426 = sbr.rel (0) target = $region45
    $region44: #{tpu_custom_call.1} parent=1 // pred_region
      // Predicated region
      $region46: #{tpu_custom_call.1} parent=44 // pred_check
        _
      $region47: #{tpu_custom_call.1} parent=44 // pred_check_branch
        %428 = sbr.rel (0) target = $region49
      $region48: #{tpu_custom_call.1} parent=44 // pred_region
        // Predicated region
        $region50: #{tpu_custom_call.1} parent=48 // pred_check
          _
        $region51: #{tpu_custom_call.1} parent=48 // pred_check_branch
          %430 = sbr.rel target = $region53
        $region52: #{tpu_custom_call.1} parent=48 // pred_region
          // Predicated region
          $region65: #{tpu_custom_call.1} parent=52 // pred_check
            _
          $region66: #{tpu_custom_call.1} parent=52 // pred_check_branch
            %445 = sbr.rel (0) target = $region68
          $region67: #{tpu_custom_call.1} parent=52 // pred_region
            loop: start=0, step=1, limit=1
            $region69: #{tpu_custom_call.1} parent=67 // loop_pre_header
              _
            $region70: #{tpu_custom_call.1} parent=67 // loop_header
              %s448 = sphi 0, %s452
              %p449 = scmp.ge.s32.totalorder %s448, 1
              %s453 = sphi [#allocation6], [#allocation6]
              %s454 = sphi %s8, %s8
            $region71: #{tpu_custom_call.1} parent=67 // loop_header_branch
              %451 = sbr.rel (%p449) target = $region75
            $region72: #{tpu_custom_call.1} parent=67 // loop_body
              %v455 = vld [vmem:[%s453] sm:$0x3]
              %456 = vst [vmem:[%s454] sm:$0x3] %v455
            $region73: #{tpu_custom_call.1} parent=67 // loop_footer
              %s452 = sadd.s32 1, %s448
            $region74: #{tpu_custom_call.1} parent=67 // loop_footer_branch
              %447 = sbr.rel target = $region70
            $region75: #{tpu_custom_call.1} parent=67 // loop_exit
              _
          $region68: #{tpu_custom_call.1} parent=52 // pred_fallthru
            _
        $region53: #{tpu_custom_call.1} parent=48 // pred_fallthru
          _
        // Predicated region
        $region54: #{tpu_custom_call.1} parent=48 // pred_check
          _
        $region55: #{tpu_custom_call.1} parent=48 // pred_check_branch
          %432 = sbr.rel (0) target = $region57
        $region56: #{tpu_custom_call.1} parent=48 // pred_region
          loop: start=0, step=1, limit=1
          $region58: #{tpu_custom_call.1} parent=56 // loop_pre_header
            _
          $region59: #{tpu_custom_call.1} parent=56 // loop_header
            %s435 = sphi 0, %s439
            %p436 = scmp.ge.s32.totalorder %s435, 1
            %s440 = sphi [#allocation6], [#allocation6]
            %s441 = sphi %s8, %s8
          $region60: #{tpu_custom_call.1} parent=56 // loop_header_branch
            %438 = sbr.rel (%p436) target = $region64
          $region61: #{tpu_custom_call.1} parent=56 // loop_body
            %v442 = vld [vmem:[%s440] sm:$0x3]
            %443 = vst [vmem:[%s441] sm:$0x3] %v442
          $region62: #{tpu_custom_call.1} parent=56 // loop_footer
            %s439 = sadd.s32 1, %s435
          $region63: #{tpu_custom_call.1} parent=56 // loop_footer_branch
            %434 = sbr.rel target = $region59
          $region64: #{tpu_custom_call.1} parent=56 // loop_exit
            _
        $region57: #{tpu_custom_call.1} parent=48 // pred_fallthru
          _
      $region49: #{tpu_custom_call.1} parent=44 // pred_fallthru
        _
      %457 = vnop
    $region45: #{tpu_custom_call.1} parent=1 // pred_fallthru
      _
    // Predicated region
    $region76: #{tpu_custom_call.1} parent=1 // pred_check
      _
    $region77: #{tpu_custom_call.1} parent=1 // pred_check_branch
      %459 = sbr.rel (0) target = $region79
    $region78: #{tpu_custom_call.1} parent=1 // pred_region
      _
    $region79: #{tpu_custom_call.1} parent=1 // pred_fallthru
      _
    %460 = vsyncpa [#allocation3], 1
    %461 = vsyncpa [#allocation5], 1

// kernel: tpu_custom_call.1
$region0: #{tpu_custom_call.1}
  #allocation0 [shape = 'u32[]', space=smem, size = 0x4, offset = 0x4, fixed_abs, tag = 'smem constant byte address 0x4 - core index']
  #allocation1 [shape = 'u32[144,128]{1,0:T(1,128)}', space=vmem, size = 0x12000, scoped, tag = 'internal scratch']
  %s0 = inlined_call_operand.hbm [shape: bf16[2,32], index: 0, kind: input, shape index: {}]
  %s1 = inlined_call_operand.vmem [shape: bf16[2,32], index: 1, kind: input, shape index: {}]
  %s2 = inlined_call_operand.vmem [shape: f32[2,3], index: 2, kind: input, shape index: {}]
  %s3 = inlined_call_operand.vmem [shape: bf16[2,4], index: 3, kind: input, shape index: {}]
  %s4 = inlined_call_operand.hbm [shape: bf16[32,32], index: 4, kind: input, shape index: {}]
  %s5 = inlined_call_operand.vmem [shape: bf16[4,32], index: 5, kind: input, shape index: {}]
  %s6 = inlined_call_operand.vmem [shape: f32[1,32], index: 6, kind: input, shape index: {}]
  %s7 = inlined_call_operand.vmem [shape: f32[1,32], index: 7, kind: input, shape index: {}]
  %s8 = inlined_call_operand.vmem [shape: f32[2,1], index: 8, kind: output, shape index: {}]
  %s9 = sld [smem:[#allocation0]]
  $region80: #{tpu_custom_call.1} parent=0
    _
  %s11 = ssub.s32 1, %s9
  %s12 = scalar_select 0, %s11, %s9
  $region1: #{tpu_custom_call.1} parent=0
    #allocation2 [shape = 'u8[4096]{0}', space=vmem, size = 0x1000, scoped, tag = 'input window, operand 0, single buffered']
    #allocation3 [shape = 's32[1]{0}', space=sflag, size = 0x4, scoped, tag = 'scoped memory for tpu_custom_call.1']
    #allocation4 [shape = 'u8[8192]{0}', space=vmem, size = 0x2000, scoped, tag = 'input window, operand 4, single buffered']
    #allocation5 [shape = 's32[1]{0}', space=sflag, size = 0x4, scoped, tag = 'scoped memory for tpu_custom_call.1']
    #allocation6 [shape = 'u8[8192]{0}', space=vmem, size = 0x2000, scoped, tag = 'output window, operand 0, single buffered']
    %13 = vsyncpa [#allocation3], 0
    %14 = vsyncpa [#allocation5], 0
    // Predicated region
    $region2: #{tpu_custom_call.1} parent=1 // pred_check
      _
    $region3: #{tpu_custom_call.1} parent=1 // pred_check_branch
      %16 = sbr.rel (0) target = $region5
    $region4: #{tpu_custom_call.1} parent=1 // pred_region
      %s18 = ssub.s32 128, 16
      %19 = vsyncadd [#allocation3], %s18
      %s20 = sshll.u32 [#allocation2], 4
      %s21 = int_to_ptr.vmem [resolvable:$true] %s20
      %26 = dma.hbm_to_vmem [thread:$0]  %s0, 16, %s21, [#allocation3], 16, 16, 1
    $region5: #{tpu_custom_call.1} parent=1 // pred_fallthru
      _
    // Predicated region
    $region6: #{tpu_custom_call.1} parent=1 // pred_check
      _
    $region7: #{tpu_custom_call.1} parent=1 // pred_check_branch
      %28 = sbr.rel (0) target = $region9
    $region8: #{tpu_custom_call.1} parent=1 // pred_region
      _
    $region9: #{tpu_custom_call.1} parent=1 // pred_fallthru
      _
    // Predicated region
    $region10: #{tpu_custom_call.1} parent=1 // pred_check
      _
    $region11: #{tpu_custom_call.1} parent=1 // pred_check_branch
      %30 = sbr.rel (0) target = $region13
    $region12: #{tpu_custom_call.1} parent=1 // pred_region
      _
    $region13: #{tpu_custom_call.1} parent=1 // pred_fallthru
      _
    // Predicated region
    $region14: #{tpu_custom_call.1} parent=1 // pred_check
      _
    $region15: #{tpu_custom_call.1} parent=1 // pred_check_branch
      %32 = sbr.rel (0) target = $region17
    $region16: #{tpu_custom_call.1} parent=1 // pred_region
      _
    $region17: #{tpu_custom_call.1} parent=1 // pred_fallthru
      _
    // Predicated region
    $region18: #{tpu_custom_call.1} parent=1 // pred_check
      _
    $region19: #{tpu_custom_call.1} parent=1 // pred_check_branch
      %34 = sbr.rel (0) target = $region21
    $region20: #{tpu_custom_call.1} parent=1 // pred_region
      %s36 = ssub.s32 256, 256
      %37 = vsyncadd [#allocation5], %s36
      %s38 = sshll.u32 [#allocation4], 4
      %s39 = int_to_ptr.vmem [resolvable:$true] %s38
      %44 = dma.hbm_to_vmem [thread:$0]  %s4, 256, %s39, [#allocation5], 64, 64, 4
    $region21: #{tpu_custom_call.1} parent=1 // pred_fallthru
      _
    // Predicated region
    $region22: #{tpu_custom_call.1} parent=1 // pred_check
      _
    $region23: #{tpu_custom_call.1} parent=1 // pred_check_branch
      %46 = sbr.rel (0) target = $region25
    $region24: #{tpu_custom_call.1} parent=1 // pred_region
      _
    $region25: #{tpu_custom_call.1} parent=1 // pred_fallthru
      _
    // Predicated region
    $region26: #{tpu_custom_call.1} parent=1 // pred_check
      _
    $region27: #{tpu_custom_call.1} parent=1 // pred_check_branch
      %48 = sbr.rel (0) target = $region29
    $region28: #{tpu_custom_call.1} parent=1 // pred_region
      _
    $region29: #{tpu_custom_call.1} parent=1 // pred_fallthru
      _
    // Predicated region
    $region30: #{tpu_custom_call.1} parent=1 // pred_check
      _
    $region31: #{tpu_custom_call.1} parent=1 // pred_check_branch
      %50 = sbr.rel (0) target = $region33
    $region32: #{tpu_custom_call.1} parent=1 // pred_region
      _
    $region33: #{tpu_custom_call.1} parent=1 // pred_fallthru
      _
    // Predicated region
    $region34: #{tpu_custom_call.1} parent=1 // pred_check
      _
    $region35: #{tpu_custom_call.1} parent=1 // pred_check_branch
      %52 = sbr.rel (0) target = $region37
    $region36: #{tpu_custom_call.1} parent=1 // pred_region
      %53 = dma.done [#allocation3], 128
    $region37: #{tpu_custom_call.1} parent=1 // pred_fallthru
      _
    // Predicated region
    $region38: #{tpu_custom_call.1} parent=1 // pred_check
      _
    $region39: #{tpu_custom_call.1} parent=1 // pred_check_branch
      %55 = sbr.rel (0) target = $region41
    $region40: #{tpu_custom_call.1} parent=1 // pred_region
      %56 = dma.done [#allocation5], 256
    $region41: #{tpu_custom_call.1} parent=1 // pred_fallthru
      _
    %v58 = vld [vmem:[#allocation2] sm:$0x1]
    %v59 = vld [vmem:[#allocation2 + $0x1] sm:$0x1]
    %v60 = vld [vmem:[#allocation2 + $0x2] sm:$0x1]
    %v61 = vld [vmem:[#allocation2 + $0x3] sm:$0x1]
    %v62 = vld [vmem:[#allocation2 + $0x4] sm:$0x1]
    %v63 = vld [vmem:[#allocation2 + $0x5] sm:$0x1]
    %v64 = vld [vmem:[#allocation2 + $0x6] sm:$0x1]
    %v65 = vld [vmem:[#allocation2 + $0x7] sm:$0x1]
    %v66 = vunpack.c.l.bf16 %v58
    %v67 = vunpack.c.l.bf16 %v59
    %v68 = vunpack.c.l.bf16 %v60
    %v69 = vunpack.c.l.bf16 %v61
    %v70 = vunpack.c.l.bf16 %v62
    %v71 = vunpack.c.l.bf16 %v63
    %v72 = vunpack.c.l.bf16 %v64
    %v73 = vunpack.c.l.bf16 %v65
    %v74 = vld [vmem:[%s1] sm:$0x1]
    %v75 = vld [vmem:[%s1 + $0x1] sm:$0x1]
    %v76 = vld [vmem:[%s1 + $0x2] sm:$0x1]
    %v77 = vld [vmem:[%s1 + $0x3] sm:$0x1]
    %v78 = vld [vmem:[%s1 + $0x4] sm:$0x1]
    %v79 = vld [vmem:[%s1 + $0x5] sm:$0x1]
    %v80 = vld [vmem:[%s1 + $0x6] sm:$0x1]
    %v81 = vld [vmem:[%s1 + $0x7] sm:$0x1]
    %v82 = vunpack.c.l.bf16 %v74
    %v83 = vunpack.c.l.bf16 %v75
    %v84 = vunpack.c.l.bf16 %v76
    %v85 = vunpack.c.l.bf16 %v77
    %v86 = vunpack.c.l.bf16 %v78
    %v87 = vunpack.c.l.bf16 %v79
    %v88 = vunpack.c.l.bf16 %v80
    %v89 = vunpack.c.l.bf16 %v81
    %v90 = vld [vmem:[%s2] sm:$0xff]
    %v91 = vld [vmem:[%s2 + $0x8] sm:$0xff]
    %93 = vset.pattern.permute.xlu0 0
    %94 = vperm.xlu0 %93, %v90
    %v95 = vpop.permute.xlu0 %94
    %98 = vset.pattern.permute.xlu0 0
    %99 = vperm.xlu0 %98, %v91
    %v100 = vpop.permute.xlu0 %99
    %v110 = vcombine.low %v66, %v67
    %v111 = vcombine.low %v68, %v69
    %v113 = vunpack.c.l.s4 1983009808
    %v114 = vunpack.c.0.s8 %v113
    %v115 = vlaneseq
    %v116 = vshrl.u32 %v115, 7
    %v117 = vsub.s32 %v114, %v116
    %v118 = vrot.slane %v110, %v117
    %v120 = vunpack.c.l.s4 1983009808
    %v121 = vunpack.c.0.s8 %v120
    %v122 = vlaneseq
    %v123 = vshrl.u32 %v122, 7
    %v124 = vsub.s32 %v121, %v123
    %v125 = vrot.slane %v111, %v124
    %v126 = vcombine.low %v118, %v125
    %v127 = vcombine.low %v70, %v71
    %v128 = vcombine.low %v72, %v73
    %v130 = vunpack.c.l.s4 1983009808
    %v131 = vunpack.c.0.s8 %v130
    %v132 = vlaneseq
    %v133 = vshrl.u32 %v132, 7
    %v134 = vsub.s32 %v131, %v133
    %v135 = vrot.slane %v127, %v134
    %v137 = vunpack.c.l.s4 1983009808
    %v138 = vunpack.c.0.s8 %v137
    %v139 = vlaneseq
    %v140 = vshrl.u32 %v139, 7
    %v141 = vsub.s32 %v138, %v140
    %v142 = vrot.slane %v128, %v141
    %v143 = vcombine.low %v135, %v142
    %v146 = vmul.f32 %v95, %v126
    %v147 = vmul.f32 %v100, %v143
    %148 = vset.pattern.permute.xlu0 1
    %149 = vperm.xlu0 %148, %v90
    %v150 = vpop.permute.xlu0 %149
    %152 = vset.pattern.permute.xlu0 1
    %153 = vperm.xlu0 %152, %v91
    %v154 = vpop.permute.xlu0 %153
    %v164 = vcombine.low %v82, %v83
    %v165 = vcombine.low %v84, %v85
    %v167 = vunpack.c.l.s4 1983009808
    %v168 = vunpack.c.0.s8 %v167
    %v169 = vlaneseq
    %v170 = vshrl.u32 %v169, 7
    %v171 = vsub.s32 %v168, %v170
    %v172 = vrot.slane %v164, %v171
    %v174 = vunpack.c.l.s4 1983009808
    %v175 = vunpack.c.0.s8 %v174
    %v176 = vlaneseq
    %v177 = vshrl.u32 %v176, 7
    %v178 = vsub.s32 %v175, %v177
    %v179 = vrot.slane %v165, %v178
    %v180 = vcombine.low %v172, %v179
    %v181 = vcombine.low %v86, %v87
    %v182 = vcombine.low %v88, %v89
    %v184 = vunpack.c.l.s4 1983009808
    %v185 = vunpack.c.0.s8 %v184
    %v186 = vlaneseq
    %v187 = vshrl.u32 %v186, 7
    %v188 = vsub.s32 %v185, %v187
    %v189 = vrot.slane %v181, %v188
    %v191 = vunpack.c.l.s4 1983009808
    %v192 = vunpack.c.0.s8 %v191
    %v193 = vlaneseq
    %v194 = vshrl.u32 %v193, 7
    %v195 = vsub.s32 %v192, %v194
    %v196 = vrot.slane %v182, %v195
    %v197 = vcombine.low %v189, %v196
    %v200 = vmul.f32 %v150, %v180
    %v201 = vmul.f32 %v154, %v197
    %v202 = vadd.f32 %v146, %v200
    %v203 = vadd.f32 %v147, %v201
    %v204 = vpack.c.bf16 %v203, %v202
    %v205 = vld [vmem:[#allocation4] sm:$0xf]
    %v206 = vld [vmem:[#allocation4 + $0x4] sm:$0xf]
    %v207 = vld [vmem:[#allocation4 + $0x8] sm:$0xf]
    %v208 = vld [vmem:[#allocation4 + $0xc] sm:$0xf]
    %v209 = vld [vmem:[%s3] sm:$0x1]
    %v210 = vld [vmem:[%s3 + $0x1] sm:$0x1]
    %v211 = vld [vmem:[%s3 + $0x2] sm:$0x1]
    %v212 = vld [vmem:[%s3 + $0x3] sm:$0x1]
    %v213 = vld [vmem:[%s3 + $0x4] sm:$0x1]
    %v214 = vld [vmem:[%s3 + $0x5] sm:$0x1]
    %v215 = vld [vmem:[%s3 + $0x6] sm:$0x1]
    %v216 = vld [vmem:[%s3 + $0x7] sm:$0x1]
    %v217 = vld [vmem:[%s5] sm:$0x3]
    %v226 = vcombine.low %v209, %v210
    %v227 = vcombine.low %v211, %v212
    %v228 = vcombine.low %v213, %v214
    %v229 = vcombine.low %v215, %v216
    %v231 = vunpack.c.l.s4 1966171168
    %v232 = vunpack.c.0.s8 %v231
    %v233 = vlaneseq
    %v234 = vshrl.u32 %v233, 7
    %v235 = vsub.s32 %v232, %v234
    %v236 = vrot.slane %v226, %v235
    %v238 = vunpack.c.l.s4 1966171168
    %v239 = vunpack.c.0.s8 %v238
    %v240 = vlaneseq
    %v241 = vshrl.u32 %v240, 7
    %v242 = vsub.s32 %v239, %v241
    %v243 = vrot.slane %v227, %v242
    %v245 = vunpack.c.l.s4 1966171168
    %v246 = vunpack.c.0.s8 %v245
    %v247 = vlaneseq
    %v248 = vshrl.u32 %v247, 7
    %v249 = vsub.s32 %v246, %v248
    %v250 = vrot.slane %v228, %v249
    %v252 = vunpack.c.l.s4 1966171168
    %v253 = vunpack.c.0.s8 %v252
    %v254 = vlaneseq
    %v255 = vshrl.u32 %v254, 7
    %v256 = vsub.s32 %v253, %v255
    %v257 = vrot.slane %v229, %v256
    %v258 = vcombine.low %v236, %v243
    %v259 = vcombine.low %v250, %v257
    %v261 = vunpack.c.l.s4 1966171168
    %v262 = vunpack.c.0.s8 %v261
    %v263 = vlaneseq
    %v264 = vshrl.u32 %v263, 7
    %v265 = vsub.s32 %v262, %v264
    %v266 = vrot.slane %v258, %v265
    %v268 = vunpack.c.l.s4 1966171168
    %v269 = vunpack.c.0.s8 %v268
    %v270 = vlaneseq
    %v271 = vshrl.u32 %v270, 7
    %v272 = vsub.s32 %v269, %v271
    %v273 = vrot.slane %v259, %v272
    %v274 = vcombine.low %v266, %v273
    %vm275 = vcmask 31744
    %v277 = vsel %vm275, %v274, 0
    %vm279 = vcmask 1041408
    %v281 = vsel %vm279, %v217, 0
    %283 = vmatprep.subr.bf16.mxu0 0
    %284 = vmatpush1.bf16.msra.mxu0 %v281
    %285 = vmatprep.subr.bf16.mxu0 0
    %286 = vmatpush1.bf16.msra.mxu0 0
    %287 = vmatprep.subr.bf16.mxu0 0
    %288 = vmatpush1.bf16.msra.mxu0 0
    %289 = vmatprep.subr.bf16.mxu0 0
    %290 = vmatpush1.bf16.msra.mxu0 0
    %291 = vmatprep.subr.bf16.mxu0 0
    %292 = vmatpush1.bf16.msra.mxu0 0
    %293 = vmatprep.subr.bf16.mxu0 0
    %294 = vmatpush1.bf16.msra.mxu0 0
    %295 = vmatprep.subr.bf16.mxu0 0
    %296 = vmatpush1.bf16.msra.mxu0 0
    %297 = vmatprep.subr.bf16.mxu0 0
    %298 = vmatpush1.bf16.msra.mxu0 0
    %299 = vmatprep.subr.bf16.mxu0 0
    %300 = vmatpush1.bf16.msra.mxu0 0
    %301 = vmatprep.subr.bf16.mxu0 0
    %302 = vmatpush1.bf16.msra.mxu0 0
    %303 = vmatprep.subr.bf16.mxu0 0
    %304 = vmatpush1.bf16.msra.mxu0 0
    %305 = vmatprep.subr.bf16.mxu0 0
    %306 = vmatpush1.bf16.msra.mxu0 0
    %307 = vmatprep.subr.bf16.mxu0 0
    %308 = vmatpush1.bf16.msra.mxu0 0
    %309 = vmatprep.subr.bf16.mxu0 0
    %310 = vmatpush1.bf16.msra.mxu0 0
    %311 = vmatprep.subr.bf16.mxu0 0
    %312 = vmatpush1.bf16.msra.mxu0 0
    %313 = vmatprep.subr.bf16.mxu0 0
    %314 = vmatpush1.bf16.msra.mxu0 0
    %315 = vmatprep.mubr.bf16.mxu0 0
    %316 = vmatmul.mubr.bf16.gmra.mrb[0].mxu0 %v277
    %v317 = vpop.f32.mrb[0].mxu0
    %v318 = vadd.f32 0.0, %v317
    %v319 = vpop.f32.mrb[0].mxu0
    %v320 = vpop.f32.mrb[0].mxu0
    %v321 = vadd.f32 0.0, %v320
    %v322 = vpop.f32.mrb[0].mxu0
    %323 = vdwg.mxu0
    %v328 = vunpack.c.l.b16 %v205
    %v329 = vunpack.c.l.b16 %v206
    %v330 = vunpack.c.l.b16 %v207
    %v331 = vunpack.c.l.b16 %v208
    %v332 = vpack.c.b16 %v329, %v328
    %v333 = vpack.c.b16 %v331, %v330
    %vm336 = vcmask 261120
    %v338 = vsel %vm336, %v204, 0
    %340 = vmatprep.subr.bf16.mxu0 0
    %341 = vmatpush1.bf16.msra.mxu0 %v332
    %342 = vmatprep.subr.bf16.mxu0 0
    %343 = vmatpush1.bf16.msra.mxu0 %v333
    %344 = vmatprep.subr.bf16.mxu0 0
    %345 = vmatpush1.bf16.msra.mxu0 0
    %346 = vmatprep.subr.bf16.mxu0 0
    %347 = vmatpush1.bf16.msra.mxu0 0
    %348 = vmatprep.subr.bf16.mxu0 0
    %349 = vmatpush1.bf16.msra.mxu0 0
    %350 = vmatprep.subr.bf16.mxu0 0
    %351 = vmatpush1.bf16.msra.mxu0 0
    %352 = vmatprep.subr.bf16.mxu0 0
    %353 = vmatpush1.bf16.msra.mxu0 0
    %354 = vmatprep.subr.bf16.mxu0 0
    %355 = vmatpush1.bf16.msra.mxu0 0
    %356 = vmatprep.subr.bf16.mxu0 0
    %357 = vmatpush1.bf16.msra.mxu0 0
    %358 = vmatprep.subr.bf16.mxu0 0
    %359 = vmatpush1.bf16.msra.mxu0 0
    %360 = vmatprep.subr.bf16.mxu0 0
    %361 = vmatpush1.bf16.msra.mxu0 0
    %362 = vmatprep.subr.bf16.mxu0 0
    %363 = vmatpush1.bf16.msra.mxu0 0
    %364 = vmatprep.subr.bf16.mxu0 0
    %365 = vmatpush1.bf16.msra.mxu0 0
    %366 = vmatprep.subr.bf16.mxu0 0
    %367 = vmatpush1.bf16.msra.mxu0 0
    %368 = vmatprep.subr.bf16.mxu0 0
    %369 = vmatpush1.bf16.msra.mxu0 0
    %370 = vmatprep.subr.bf16.mxu0 0
    %371 = vmatpush1.bf16.msra.mxu0 0
    %372 = vmatprep.mubr.bf16.mxu0 0
    %373 = vmatmul.mubr.bf16.gmra.mrb[0].mxu0 %v338
    %v374 = vpop.f32.mrb[0].mxu0
    %v375 = vadd.f32 %v318, %v374
    %v376 = vpop.f32.mrb[0].mxu0
    %v377 = vpop.f32.mrb[0].mxu0
    %v378 = vadd.f32 %v321, %v377
    %v379 = vpop.f32.mrb[0].mxu0
    %380 = vdwg.mxu0
    %v381 = vld [vmem:[%s6] sm:$0x1]
    %382 = vset.pattern.permute.xlu0 2
    %383 = vperm.xlu0 %382, %v90
    %v384 = vpop.permute.xlu0 %383
    %386 = vset.pattern.permute.xlu0 2
    %387 = vperm.xlu0 %386, %v91
    %v388 = vpop.permute.xlu0 %387
    %v391 = vlaneseq
    %v392 = vshrl.u32 %v391, 7
    %v393 = vsub.s32 0, %v392
    %v394 = vrot.slane %v381, %v393
    %v396 = vmul.f32 %v384, %v394
    %v397 = vmul.f32 %v388, %v394
    %v398 = vadd.f32 %v375, %v396
    %v399 = vadd.f32 %v378, %v397
    %v400 = vld [vmem:[%s7] sm:$0x1]
    %v402 = vlaneseq
    %v403 = vshrl.u32 %v402, 7
    %v404 = vsub.s32 0, %v403
    %v405 = vrot.slane %v400, %v404
    %v407 = vadd.f32 %v398, %v405
    %v408 = vadd.f32 %v399, %v405
    %v409 = vsub.f32 %v407, %v180
    %v410 = vsub.f32 %v408, %v197
    %v411 = vmul.f32 %v409, %v409
    %v412 = vmul.f32 %v410, %v410
    %v413 = vsel %vm336, %v411, 0.0
    %414 = vadd.xlane.f32.xlu0 %v413
    %v415 = vpop.xlane.xlu0 %414
    %v416 = vsel %vm336, %v412, 0.0
    %417 = vadd.xlane.f32.xlu0 %v416
    %v418 = vpop.xlane.xlu0 %417
    %v419 = vrcp.pop 32.0
    %v420 = vmul.f32 %v415, %v419
    %v421 = vmul.f32 %v418, %v419
    %vm422 = vcmask 7168
    %423 = vst.msk [vmem:[#allocation6] sm:$0xff] %vm422, %v420
    %424 = vst.msk [vmem:[#allocation6 + $0x8] sm:$0xff] %vm422, %v421
    // Predicated region
    $region42: #{tpu_custom_call.1} parent=1 // pred_check
      _
    $region43: #{tpu_custom_call.1} parent=1 // pred_check_branch
      %426 = sbr.rel (0) target = $region45
    $region44: #{tpu_custom_call.1} parent=1 // pred_region
      // Predicated region
      $region46: #{tpu_custom_call.1} parent=44 // pred_check
        _
      $region47: #{tpu_custom_call.1} parent=44 // pred_check_branch
        %428 = sbr.rel (0) target = $region49
      $region48: #{tpu_custom_call.1} parent=44 // pred_region
        // Predicated region
        $region50: #{tpu_custom_call.1} parent=48 // pred_check
          _
        $region51: #{tpu_custom_call.1} parent=48 // pred_check_branch
          %430 = sbr.rel target = $region53
        $region52: #{tpu_custom_call.1} parent=48 // pred_region
          // Predicated region
          $region65: #{tpu_custom_call.1} parent=52 // pred_check
            _
          $region66: #{tpu_custom_call.1} parent=52 // pred_check_branch
            %445 = sbr.rel (0) target = $region68
          $region67: #{tpu_custom_call.1} parent=52 // pred_region
            loop: start=0, step=1, limit=1
            $region69: #{tpu_custom_call.1} parent=67 // loop_pre_header
              _
            $region70: #{tpu_custom_call.1} parent=67 // loop_header
              %s448 = sphi 0, %s452
              %p449 = scmp.ge.s32.totalorder %s448, 1
              %s453 = sphi [#allocation6], [#allocation6]
              %s454 = sphi %s8, %s8
            $region71: #{tpu_custom_call.1} parent=67 // loop_header_branch
              %451 = sbr.rel (%p449) target = $region75
            $region72: #{tpu_custom_call.1} parent=67 // loop_body
              %v455 = vld [vmem:[%s453] sm:$0x3]
              %456 = vst [vmem:[%s454] sm:$0x3] %v455
            $region73: #{tpu_custom_call.1} parent=67 // loop_footer
              %s452 = sadd.s32 1, %s448
            $region74: #{tpu_custom_call.1} parent=67 // loop_footer_branch
              %447 = sbr.rel target = $region70
            $region75: #{tpu_custom_call.1} parent=67 // loop_exit
              _
          $region68: #{tpu_custom_call.1} parent=52 // pred_fallthru
            _
        $region53: #{tpu_custom_call.1} parent=48 // pred_fallthru
          _
        // Predicated region
        $region54: #{tpu_custom_call.1} parent=48 // pred_check
          _
        $region55: #{tpu_custom_call.1} parent=48 // pred_check_branch
          %432 = sbr.rel (0) target = $region57
        $region56: #{tpu_custom_call.1} parent=48 // pred_region
          loop: start=0, step=1, limit=1
          $region58: #{tpu_custom_call.1} parent=56 // loop_pre_header
            _
          $region59: #{tpu_custom_call.1} parent=56 // loop_header
            %s435 = sphi 0, %s439
            %p436 = scmp.ge.s32.totalorder %s435, 1
            %s440 = sphi [#allocation6], [#allocation6]
            %s441 = sphi %s8, %s8
          $region60: #{tpu_custom_call.1} parent=56 // loop_header_branch
            %438 = sbr.rel (%p436) target = $region64
          $region61: #{tpu_custom_call.1} parent=56 // loop_body
            %v442 = vld [vmem:[%s440] sm:$0x3]
            %443 = vst [vmem:[%s441] sm:$0x3] %v442
          $region62: #{tpu_custom_call.1} parent=56 // loop_footer
            %s439 = sadd.s32 1, %s435
          $region63: #{tpu_custom_call.1} parent=56 // loop_footer_branch
            %434 = sbr.rel target = $region59
          $region64: #{tpu_custom_call.1} parent=56 // loop_exit
            _
        $region57: #{tpu_custom_call.1} parent=48 // pred_fallthru
          _
      $region49: #{tpu_custom_call.1} parent=44 // pred_fallthru
        _
      %457 = vnop
    $region45: #{tpu_custom_call.1} parent=1 // pred_fallthru
      _
    // Predicated region
    $region76: #{tpu_custom_call.1} parent=1 // pred_check
      _
    $region77: #{tpu_custom_call.1} parent=1 // pred_check_branch
      %459 = sbr.rel (0) target = $region79
    $region78: #{tpu_custom_call.1} parent=1 // pred_region
      _
    $region79: #{tpu_custom_call.1} parent=1 // pred_fallthru
      _
    %460 = vsyncpa [#allocation3], 1
    %461 = vsyncpa [#allocation5], 1

</llo_original>
